<compile_context>
chip_gen: v5e
topology: v5e:2x2
jax: 0.10.0
libtpu: 0.0.40
codegen_flags: <defaults>
</compile_context>

<pallas_src>
import functools
import math

import jax
import jax.numpy as jnp
from jax import lax
from jax.experimental import pallas as pl
from jax.experimental.pallas import tpu as pltpu

_MASK_NEG = -1e30   # additive attention-mask bias for cross-batch pairs
_LN_EPS = 1e-5


def _encoder_kernel(x_ref, p_ref, o_ref, tok_scr, *,
                    batch, seq, d_model, ffw_dim, x_dim):
    B, S, D, F = batch, seq, d_model, ffw_dim
    BS = B * S

    # Row offsets inside the packed parameter slab.
    r_w = x_dim            # [Wq*scale | Wk | Wv | Wo | W1]   (D rows)
    r_w2 = r_w + D         # W2                               (F rows)
    r_b = r_w2 + F         # bias / LayerNorm rows            (8 rows)
    r_m = r_b + 8          # attention mask bias              (BS rows)

    # ---- fused ConceptNet 'index' gather: one-hot selection matmul --------
    x_raw = x_ref[...].astype(jnp.float32)                          # (B, x_dim)
    sel = p_ref[0:x_dim, 0:S * D]                                   # (x_dim, S*D)
    tok = jnp.dot(x_raw, sel, preferred_element_type=jnp.float32)   # (B, S*D)

    # (B, S*D) -> (B*S, D) through VMEM scratch with static slice copies
    # (avoids a lane-crossing vector reshape).
    for b in range(B):
        for s in range(S):
            tok_scr[b * S + s:b * S + s + 1, :] = tok[b:b + 1, s * D:(s + 1) * D]
    x_tok = tok_scr[...]                                            # (BS, D)

    # ---- fused QKV projection (1/sqrt(D) pre-folded into Q weight/bias) ---
    w_qkv = p_ref[r_w:r_w + D, 0:3 * D]
    b_qkv = p_ref[r_b + 0:r_b + 1, 0:3 * D]
    qkv = jnp.dot(x_tok, w_qkv, preferred_element_type=jnp.float32) + b_qkv
    q = qkv[:, 0:D]
    k = qkv[:, D:2 * D]
    v = qkv[:, 2 * D:3 * D]

    # ---- block-diagonal-masked attention over all B*S tokens at once ------
    mask_bias = p_ref[r_m:r_m + BS, 0:BS]                           # 0 / -1e30
    scores = lax.dot_general(q, k, (((1,), (1,)), ((), ())),
                             preferred_element_type=jnp.float32) + mask_bias
    scores = scores - jnp.max(scores, axis=-1, keepdims=True)
    probs = jnp.exp(scores)                       # masked lanes -> exactly 0
    probs = probs / jnp.sum(probs, axis=-1, keepdims=True)          # exact softmax
    attn = jnp.dot(probs, v, preferred_element_type=jnp.float32)    # (BS, D)

    # ---- output projection + residual + LayerNorm1 (post-norm) ------------
    w_o = p_ref[r_w:r_w + D, 3 * D:4 * D]
    b_o = p_ref[r_b + 2:r_b + 3, 0:D]
    h = x_tok + jnp.dot(attn, w_o, preferred_element_type=jnp.float32) + b_o
    g1 = p_ref[r_b + 4:r_b + 5, 0:D]
    be1 = p_ref[r_b + 5:r_b + 6, 0:D]
    mu = jnp.mean(h, axis=-1, keepdims=True)
    var = jnp.mean((h - mu) ** 2, axis=-1, keepdims=True)
    h = (h - mu) * lax.rsqrt(var + _LN_EPS) * g1 + be1

    # ---- feed-forward: Linear -> ReLU -> Linear ----------------------------
    w_1 = p_ref[r_w:r_w + D, 4 * D:4 * D + F]
    b_1 = p_ref[r_b + 1:r_b + 2, 0:F]
    w_2 = p_ref[r_w2:r_w2 + F, 0:D]
    b_2 = p_ref[r_b + 3:r_b + 4, 0:D]
    f = jnp.dot(h, w_1, preferred_element_type=jnp.float32) + b_1
    f = jnp.maximum(f, 0.0)
    f = jnp.dot(f, w_2, preferred_element_type=jnp.float32) + b_2

    # ---- residual + LayerNorm2 ---------------------------------------------
    g2 = p_ref[r_b + 6:r_b + 7, 0:D]
    be2 = p_ref[r_b + 7:r_b + 8, 0:D]
    h2 = h + f
    mu2 = jnp.mean(h2, axis=-1, keepdims=True)
    var2 = jnp.mean((h2 - mu2) ** 2, axis=-1, keepdims=True)
    out = ((h2 - mu2) * lax.rsqrt(var2 + _LN_EPS) * g2 + be2).astype(o_ref.dtype)

    # ---- lane-dense (B, S*D) output (the HBM store is one unmasked tile) --
    for b in range(B):
        for s in range(S):
            o_ref[b:b + 1, s * D:(s + 1) * D] = out[b * S + s:b * S + s + 1, :]


def transformer_encoder_net(x, slab, *, batch, seq, d_model, ffw_dim, x_dim):
    """x: (B, x_dim) raw features; slab: packed (R, 128) parameter slab."""
    B, S, D, F = batch, seq, d_model, ffw_dim
    R = slab.shape[0]
    assert slab.shape[1] == 128

    kernel = functools.partial(_encoder_kernel, batch=B, seq=S, d_model=D,
                               ffw_dim=F, x_dim=x_dim)

    grid_spec = pltpu.PrefetchScalarGridSpec(
        num_scalar_prefetch=0,
        grid=(1,),                                   # single step: no pipeline overhead
        in_specs=[
            pl.BlockSpec((B, x_dim), lambda i: (0, 0)),   # raw features
            pl.BlockSpec((R, 128), lambda i: (0, 0)),     # packed params (lane-dense)
        ],
        out_specs=pl.BlockSpec((B, S * D), lambda i: (0, 0)),
        scratch_shapes=[pltpu.VMEM((B * S, D), jnp.float32)],
    )

    out2d = pl.pallas_call(
        kernel,
        out_shape=jax.ShapeDtypeStruct((B, S * D), x.dtype),
        grid_spec=grid_spec,
        compiler_params=pltpu.CompilerParams(dimension_semantics=("arbitrary",)),
    )(x, slab)
    return out2d.reshape(B, S, D)


def init_weights(key, d_model, ffw_dim):
    """Raw (pre-transposed to (in, out)) weights, as a torch layer would hold."""
    D, F = d_model, ffw_dim
    ks = jax.random.split(key, 12)
    s = 0.05

    def rand(k, shape):
        return s * jax.random.normal(k, shape, jnp.float32)

    return dict(
        wq_t=rand(ks[0], (D, D)), wk_t=rand(ks[1], (D, D)), wv_t=rand(ks[2], (D, D)),
        wo_t=rand(ks[3], (D, D)), w1_t=rand(ks[4], (D, F)), w2_t=rand(ks[5], (F, D)),
        bq=rand(ks[6], (D,)), bk=rand(ks[7], (D,)), bv=rand(ks[8], (D,)),
        bo=rand(ks[9], (D,)), b1=rand(ks[10], (F,)), b2=rand(ks[11], (D,)),
        ln1_g=jnp.ones((D,), jnp.float32), ln1_b=jnp.zeros((D,), jnp.float32),
        ln2_g=jnp.ones((D,), jnp.float32), ln2_b=jnp.zeros((D,), jnp.float32),
    )


def pack_params(go_mask, w, *, x_dim, d_model, ffw_dim, batch, seq):
    """Pack gather matrix + all weights/biases/mask into one (R, 128) slab."""
    D, F, S, B = d_model, ffw_dim, seq, batch
    BS, SD = B * S, S * D
    assert SD <= 128 and 4 * D + F <= 128 and 3 * D <= 128 and BS <= 128 and F <= 128

    rows = ((x_dim + D + F + 8 + BS + 7) // 8) * 8
    slab = jnp.zeros((rows, 128), jnp.float32)

    # one-hot 'index' gather: sel[i, s*D + d] = 1 iff go_mask[s, d] == i
    sel = jax.nn.one_hot(go_mask.reshape(-1), x_dim, dtype=jnp.float32).T
    slab = slab.at[0:x_dim, 0:SD].set(sel)

    scale = 1.0 / math.sqrt(D)
    r = x_dim
    slab = slab.at[r:r + D, 0:D].set(w["wq_t"] * scale)       # scale folded into Q
    slab = slab.at[r:r + D, D:2 * D].set(w["wk_t"])
    slab = slab.at[r:r + D, 2 * D:3 * D].set(w["wv_t"])
    slab = slab.at[r:r + D, 3 * D:4 * D].set(w["wo_t"])
    slab = slab.at[r:r + D, 4 * D:4 * D + F].set(w["w1_t"])
    r += D
    slab = slab.at[r:r + F, 0:D].set(w["w2_t"])
    r += F
    slab = slab.at[r + 0, 0:3 * D].set(
        jnp.concatenate([w["bq"] * scale, w["bk"], w["bv"]]))
    slab = slab.at[r + 1, 0:F].set(w["b1"])
    slab = slab.at[r + 2, 0:D].set(w["bo"])
    slab = slab.at[r + 3, 0:D].set(w["b2"])
    slab = slab.at[r + 4, 0:D].set(w["ln1_g"])
    slab = slab.at[r + 5, 0:D].set(w["ln1_b"])
    slab = slab.at[r + 6, 0:D].set(w["ln2_g"])
    slab = slab.at[r + 7, 0:D].set(w["ln2_b"])
    r += 8
    t = jnp.arange(BS)
    same_batch = (t[:, None] // S) == (t[None, :] // S)
    slab = slab.at[r:r + BS, 0:BS].set(jnp.where(same_batch, 0.0, _MASK_NEG))
    return slab


# ---------------------------- pure-JAX reference ----------------------------
def _layer_norm(x, g, b):
    mu = jnp.mean(x, axis=-1, keepdims=True)
    var = jnp.mean((x - mu) ** 2, axis=-1, keepdims=True)
    return (x - mu) * lax.rsqrt(var + _LN_EPS) * g + b


def reference_forward(x, go_mask, w, d_model):
    scale = 1.0 / math.sqrt(d_model)
    tok = x[:, go_mask]                                   # (B, S, D) 'index' gather
    q = tok @ w["wq_t"] + w["bq"]
    k = tok @ w["wk_t"] + w["bk"]
    v = tok @ w["wv_t"] + w["bv"]
    s = jnp.einsum("bqd,bkd->bqk", q, k) * scale
    p = jax.nn.softmax(s, axis=-1)
    attn = jnp.einsum("bqk,bkd->bqd", p, v)
    h = _layer_norm(tok + attn @ w["wo_t"] + w["bo"], w["ln1_g"], w["ln1_b"])
    f = jnp.maximum(h @ w["w1_t"] + w["b1"], 0.0) @ w["w2_t"] + w["b2"]
    return _layer_norm(h + f, w["ln2_g"], w["ln2_b"])


if __name__ == "__main__":
    key = jax.random.PRNGKey(0)
    k_x, k_mask, k_w = jax.random.split(key, 3)

    B = 2            # batch
    x_dim = 64       # raw gene-expression feature dim
    num_GOs = 8      # sequence length S (one token per GO concept)
    d_model = 16     # genes per GO == input_dim == final_feat_dim
    ffw_dim = 32     # dim_feedforward

    x = jax.random.normal(k_x, (B, x_dim), jnp.float32)
    go_mask = jax.random.randint(k_mask, (num_GOs, d_model), 0, x_dim)
    weights = init_weights(k_w, d_model, ffw_dim)
    slab = pack_params(go_mask, weights, x_dim=x_dim, d_model=d_model,
                       ffw_dim=ffw_dim, batch=B, seq=num_GOs)

    out = transformer_encoder_net(x, slab, batch=B, seq=num_GOs,
                                  d_model=d_model, ffw_dim=ffw_dim, x_dim=x_dim)
    jax.block_until_ready(out)
    assert out.shape == (B, num_GOs, d_model)

    ref = reference_forward(x, go_mask, weights, d_model)
    max_err = float(jnp.max(jnp.abs(out - ref)))
    assert max_err < 5e-2, f"kernel/reference mismatch: max abs err {max_err}"
    print("KERNEL_OK")
</pallas_src>

<mosaic_0001>
module attributes {stable_mosaic.version = 11 : i64} {
  func.func @_encoder_kernel(%arg0: i32, %arg1: memref<2x64xf32, #tpu.memory_space<vmem>>, %arg2: memref<136x128xf32, #tpu.memory_space<vmem>>, %arg3: memref<2x128xf32, #tpu.memory_space<vmem>>, %arg4: memref<16x16xf32, #tpu.memory_space<vmem>>) attributes {dimension_semantics = [#tpu.dimension_semantics<arbitrary>], iteration_bounds = array<i64: 1>, scalar_prefetch = 0 : i64, scratch_operands = 1 : i64, tpu.core_type = #tpu.core_type<tc>, window_params = [{pipeline_mode = #tpu.pipeline_mode<synchronous>, transform_indices = @transform_0, window_bounds = array<i64: 2, 64>}, {pipeline_mode = #tpu.pipeline_mode<synchronous>, transform_indices = @transform_1, window_bounds = array<i64: 136, 128>}, {pipeline_mode = #tpu.pipeline_mode<synchronous>, transform_indices = @transform_2, window_bounds = array<i64: 2, 128>}]} {
    %c0 = arith.constant 0 : index
    %c0_0 = arith.constant 0 : index
    %0 = vector.load %arg1[%c0, %c0_0] : memref<2x64xf32, #tpu.memory_space<vmem>>, vector<2x64xf32>
    %c0_1 = arith.constant 0 : index
    %c0_2 = arith.constant 0 : index
    %1 = vector.load %arg2[%c0_1, %c0_2] : memref<136x128xf32, #tpu.memory_space<vmem>>, vector<64x128xf32>
    %cst = arith.constant dense<0.000000e+00> : vector<2x128xf32>
    %2 = tpu.matmul %0, %1, %cst {dimension_numbers = #tpu.dot_dimension_numbers<[1], [0], [0], [1], [0, 0, 1, 1], [], []>} : vector<2x64xf32>, vector<64x128xf32>, vector<2x128xf32> -> vector<2x128xf32>
    %3 = vector.extract_strided_slice %2 {offsets = [0, 0], sizes = [1, 16], strides = [1, 1]} : vector<2x128xf32> to vector<1x16xf32>
    %c0_3 = arith.constant 0 : index
    %c0_4 = arith.constant 0 : index
    %4 = vector.load %arg4[%c0_3, %c0_4] : memref<16x16xf32, #tpu.memory_space<vmem>>, vector<1x16xf32>
    tpu.vector_store %arg4[%c0_3, %c0_4], %3 {strides = array<i32>} : memref<16x16xf32, #tpu.memory_space<vmem>>, vector<1x16xf32>,
    %5 = vector.extract_strided_slice %2 {offsets = [0, 16], sizes = [1, 16], strides = [1, 1]} : vector<2x128xf32> to vector<1x16xf32>
    %c1 = arith.constant 1 : index
    %c0_5 = arith.constant 0 : index
    %6 = vector.load %arg4[%c1, %c0_5] : memref<16x16xf32, #tpu.memory_space<vmem>>, vector<1x16xf32>
    tpu.vector_store %arg4[%c1, %c0_5], %5 {strides = array<i32>} : memref<16x16xf32, #tpu.memory_space<vmem>>, vector<1x16xf32>,
    %7 = vector.extract_strided_slice %2 {offsets = [0, 32], sizes = [1, 16], strides = [1, 1]} : vector<2x128xf32> to vector<1x16xf32>
    %c2 = arith.constant 2 : index
    %c0_6 = arith.constant 0 : index
    %8 = vector.load %arg4[%c2, %c0_6] : memref<16x16xf32, #tpu.memory_space<vmem>>, vector<1x16xf32>
    tpu.vector_store %arg4[%c2, %c0_6], %7 {strides = array<i32>} : memref<16x16xf32, #tpu.memory_space<vmem>>, vector<1x16xf32>,
    %9 = vector.extract_strided_slice %2 {offsets = [0, 48], sizes = [1, 16], strides = [1, 1]} : vector<2x128xf32> to vector<1x16xf32>
    %c3 = arith.constant 3 : index
    %c0_7 = arith.constant 0 : index
    %10 = vector.load %arg4[%c3, %c0_7] : memref<16x16xf32, #tpu.memory_space<vmem>>, vector<1x16xf32>
    tpu.vector_store %arg4[%c3, %c0_7], %9 {strides = array<i32>} : memref<16x16xf32, #tpu.memory_space<vmem>>, vector<1x16xf32>,
    %11 = vector.extract_strided_slice %2 {offsets = [0, 64], sizes = [1, 16], strides = [1, 1]} : vector<2x128xf32> to vector<1x16xf32>
    %c4 = arith.constant 4 : index
    %c0_8 = arith.constant 0 : index
    %12 = vector.load %arg4[%c4, %c0_8] : memref<16x16xf32, #tpu.memory_space<vmem>>, vector<1x16xf32>
    tpu.vector_store %arg4[%c4, %c0_8], %11 {strides = array<i32>} : memref<16x16xf32, #tpu.memory_space<vmem>>, vector<1x16xf32>,
    %13 = vector.extract_strided_slice %2 {offsets = [0, 80], sizes = [1, 16], strides = [1, 1]} : vector<2x128xf32> to vector<1x16xf32>
    %c5 = arith.constant 5 : index
    %c0_9 = arith.constant 0 : index
    %14 = vector.load %arg4[%c5, %c0_9] : memref<16x16xf32, #tpu.memory_space<vmem>>, vector<1x16xf32>
    tpu.vector_store %arg4[%c5, %c0_9], %13 {strides = array<i32>} : memref<16x16xf32, #tpu.memory_space<vmem>>, vector<1x16xf32>,
    %15 = vector.extract_strided_slice %2 {offsets = [0, 96], sizes = [1, 16], strides = [1, 1]} : vector<2x128xf32> to vector<1x16xf32>
    %c6 = arith.constant 6 : index
    %c0_10 = arith.constant 0 : index
    %16 = vector.load %arg4[%c6, %c0_10] : memref<16x16xf32, #tpu.memory_space<vmem>>, vector<1x16xf32>
    tpu.vector_store %arg4[%c6, %c0_10], %15 {strides = array<i32>} : memref<16x16xf32, #tpu.memory_space<vmem>>, vector<1x16xf32>,
    %17 = vector.extract_strided_slice %2 {offsets = [0, 112], sizes = [1, 16], strides = [1, 1]} : vector<2x128xf32> to vector<1x16xf32>
    %c7 = arith.constant 7 : index
    %c0_11 = arith.constant 0 : index
    %18 = vector.load %arg4[%c7, %c0_11] : memref<16x16xf32, #tpu.memory_space<vmem>>, vector<1x16xf32>
    tpu.vector_store %arg4[%c7, %c0_11], %17 {strides = array<i32>} : memref<16x16xf32, #tpu.memory_space<vmem>>, vector<1x16xf32>,
    %19 = vector.extract_strided_slice %2 {offsets = [1, 0], sizes = [1, 16], strides = [1, 1]} : vector<2x128xf32> to vector<1x16xf32>
    %c8 = arith.constant 8 : index
    %c0_12 = arith.constant 0 : index
    %20 = vector.load %arg4[%c8, %c0_12] : memref<16x16xf32, #tpu.memory_space<vmem>>, vector<1x16xf32>
    tpu.vector_store %arg4[%c8, %c0_12], %19 {strides = array<i32>} : memref<16x16xf32, #tpu.memory_space<vmem>>, vector<1x16xf32>,
    %21 = vector.extract_strided_slice %2 {offsets = [1, 16], sizes = [1, 16], strides = [1, 1]} : vector<2x128xf32> to vector<1x16xf32>
    %c9 = arith.constant 9 : index
    %c0_13 = arith.constant 0 : index
    %22 = vector.load %arg4[%c9, %c0_13] : memref<16x16xf32, #tpu.memory_space<vmem>>, vector<1x16xf32>
    tpu.vector_store %arg4[%c9, %c0_13], %21 {strides = array<i32>} : memref<16x16xf32, #tpu.memory_space<vmem>>, vector<1x16xf32>,
    %23 = vector.extract_strided_slice %2 {offsets = [1, 32], sizes = [1, 16], strides = [1, 1]} : vector<2x128xf32> to vector<1x16xf32>
    %c10 = arith.constant 10 : index
    %c0_14 = arith.constant 0 : index
    %24 = vector.load %arg4[%c10, %c0_14] : memref<16x16xf32, #tpu.memory_space<vmem>>, vector<1x16xf32>
    tpu.vector_store %arg4[%c10, %c0_14], %23 {strides = array<i32>} : memref<16x16xf32, #tpu.memory_space<vmem>>, vector<1x16xf32>,
    %25 = vector.extract_strided_slice %2 {offsets = [1, 48], sizes = [1, 16], strides = [1, 1]} : vector<2x128xf32> to vector<1x16xf32>
    %c11 = arith.constant 11 : index
    %c0_15 = arith.constant 0 : index
    %26 = vector.load %arg4[%c11, %c0_15] : memref<16x16xf32, #tpu.memory_space<vmem>>, vector<1x16xf32>
    tpu.vector_store %arg4[%c11, %c0_15], %25 {strides = array<i32>} : memref<16x16xf32, #tpu.memory_space<vmem>>, vector<1x16xf32>,
    %27 = vector.extract_strided_slice %2 {offsets = [1, 64], sizes = [1, 16], strides = [1, 1]} : vector<2x128xf32> to vector<1x16xf32>
    %c12 = arith.constant 12 : index
    %c0_16 = arith.constant 0 : index
    %28 = vector.load %arg4[%c12, %c0_16] : memref<16x16xf32, #tpu.memory_space<vmem>>, vector<1x16xf32>
    tpu.vector_store %arg4[%c12, %c0_16], %27 {strides = array<i32>} : memref<16x16xf32, #tpu.memory_space<vmem>>, vector<1x16xf32>,
    %29 = vector.extract_strided_slice %2 {offsets = [1, 80], sizes = [1, 16], strides = [1, 1]} : vector<2x128xf32> to vector<1x16xf32>
    %c13 = arith.constant 13 : index
    %c0_17 = arith.constant 0 : index
    %30 = vector.load %arg4[%c13, %c0_17] : memref<16x16xf32, #tpu.memory_space<vmem>>, vector<1x16xf32>
    tpu.vector_store %arg4[%c13, %c0_17], %29 {strides = array<i32>} : memref<16x16xf32, #tpu.memory_space<vmem>>, vector<1x16xf32>,
    %31 = vector.extract_strided_slice %2 {offsets = [1, 96], sizes = [1, 16], strides = [1, 1]} : vector<2x128xf32> to vector<1x16xf32>
    %c14 = arith.constant 14 : index
    %c0_18 = arith.constant 0 : index
    %32 = vector.load %arg4[%c14, %c0_18] : memref<16x16xf32, #tpu.memory_space<vmem>>, vector<1x16xf32>
    tpu.vector_store %arg4[%c14, %c0_18], %31 {strides = array<i32>} : memref<16x16xf32, #tpu.memory_space<vmem>>, vector<1x16xf32>,
    %33 = vector.extract_strided_slice %2 {offsets = [1, 112], sizes = [1, 16], strides = [1, 1]} : vector<2x128xf32> to vector<1x16xf32>
    %c15 = arith.constant 15 : index
    %c0_19 = arith.constant 0 : index
    %34 = vector.load %arg4[%c15, %c0_19] : memref<16x16xf32, #tpu.memory_space<vmem>>, vector<1x16xf32>
    tpu.vector_store %arg4[%c15, %c0_19], %33 {strides = array<i32>} : memref<16x16xf32, #tpu.memory_space<vmem>>, vector<1x16xf32>,
    %c0_20 = arith.constant 0 : index
    %c0_21 = arith.constant 0 : index
    %35 = vector.load %arg4[%c0_20, %c0_21] : memref<16x16xf32, #tpu.memory_space<vmem>>, vector<16x16xf32>
    %c64 = arith.constant 64 : index
    %c0_22 = arith.constant 0 : index
    %36 = vector.load %arg2[%c64, %c0_22] : memref<136x128xf32, #tpu.memory_space<vmem>>, vector<16x48xf32>
    %c112 = arith.constant 112 : index
    %c0_23 = arith.constant 0 : index
    %37 = vector.load %arg2[%c112, %c0_23] : memref<136x128xf32, #tpu.memory_space<vmem>>, vector<1x48xf32>
    %cst_24 = arith.constant dense<0.000000e+00> : vector<16x48xf32>
    %38 = tpu.matmul %35, %36, %cst_24 {dimension_numbers = #tpu.dot_dimension_numbers<[1], [0], [0], [1], [0, 0, 1, 1], [], []>} : vector<16x16xf32>, vector<16x48xf32>, vector<16x48xf32> -> vector<16x48xf32>
    %39 = vector.broadcast %37 : vector<1x48xf32> to vector<16x48xf32>
    %40 = arith.addf %38, %39 : vector<16x48xf32>
    %41 = vector.extract_strided_slice %40 {offsets = [0, 0], sizes = [16, 16], strides = [1, 1]} : vector<16x48xf32> to vector<16x16xf32>
    %42 = vector.extract_strided_slice %40 {offsets = [0, 16], sizes = [16, 16], strides = [1, 1]} : vector<16x48xf32> to vector<16x16xf32>
    %43 = vector.extract_strided_slice %40 {offsets = [0, 32], sizes = [16, 16], strides = [1, 1]} : vector<16x48xf32> to vector<16x16xf32>
    %c120 = arith.constant 120 : index
    %c0_25 = arith.constant 0 : index
    %44 = vector.load %arg2[%c120, %c0_25] : memref<136x128xf32, #tpu.memory_space<vmem>>, vector<16x16xf32>
    %cst_26 = arith.constant dense<0.000000e+00> : vector<16x16xf32>
    %45 = tpu.matmul %41, %42, %cst_26 {dimension_numbers = #tpu.dot_dimension_numbers<[1], [1], [0], [0], [0, 0, 1, 0], [], []>} : vector<16x16xf32>, vector<16x16xf32>, vector<16x16xf32> -> vector<16x16xf32>
    %46 = arith.addf %45, %44 : vector<16x16xf32>
    %cst_27 = arith.constant dense<0xFF800000> : vector<16xf32>
    %47 = vector.multi_reduction <maximumf>, %46, %cst_27 [1] : vector<16x16xf32> to vector<16xf32>
    %48 = vector.shape_cast %47 : vector<16xf32> to vector<16x1xf32>
    %49 = vector.broadcast %48 : vector<16x1xf32> to vector<16x16xf32>
    %50 = arith.subf %46, %49 : vector<16x16xf32>
    %51 = math.exp %50 : vector<16x16xf32>
    %cst_28 = arith.constant dense<0.000000e+00> : vector<16xf32>
    %52 = vector.multi_reduction <add>, %51, %cst_28 [1] : vector<16x16xf32> to vector<16xf32>
    %53 = vector.shape_cast %52 : vector<16xf32> to vector<16x1xf32>
    %54 = vector.broadcast %53 : vector<16x1xf32> to vector<16x16xf32>
    %55 = arith.divf %51, %54 : vector<16x16xf32>
    %cst_29 = arith.constant dense<0.000000e+00> : vector<16x16xf32>
    %56 = tpu.matmul %55, %43, %cst_29 {dimension_numbers = #tpu.dot_dimension_numbers<[1], [0], [0], [1], [0, 0, 1, 1], [], []>} : vector<16x16xf32>, vector<16x16xf32>, vector<16x16xf32> -> vector<16x16xf32>
    %c64_30 = arith.constant 64 : index
    %c48 = arith.constant 48 : index
    %57 = vector.load %arg2[%c64_30, %c48] : memref<136x128xf32, #tpu.memory_space<vmem>>, vector<16x16xf32>
    %c114 = arith.constant 114 : index
    %c0_31 = arith.constant 0 : index
    %58 = vector.load %arg2[%c114, %c0_31] : memref<136x128xf32, #tpu.memory_space<vmem>>, vector<1x16xf32>
    %cst_32 = arith.constant dense<0.000000e+00> : vector<16x16xf32>
    %59 = tpu.matmul %56, %57, %cst_32 {dimension_numbers = #tpu.dot_dimension_numbers<[1], [0], [0], [1], [0, 0, 1, 1], [], []>} : vector<16x16xf32>, vector<16x16xf32>, vector<16x16xf32> -> vector<16x16xf32>
    %60 = arith.addf %35, %59 : vector<16x16xf32>
    %61 = vector.broadcast %58 : vector<1x16xf32> to vector<16x16xf32>
    %62 = arith.addf %60, %61 : vector<16x16xf32>
    %c116 = arith.constant 116 : index
    %c0_33 = arith.constant 0 : index
    %63 = vector.load %arg2[%c116, %c0_33] : memref<136x128xf32, #tpu.memory_space<vmem>>, vector<1x16xf32>
    %c117 = arith.constant 117 : index
    %c0_34 = arith.constant 0 : index
    %64 = vector.load %arg2[%c117, %c0_34] : memref<136x128xf32, #tpu.memory_space<vmem>>, vector<1x16xf32>
    %cst_35 = arith.constant dense<0.000000e+00> : vector<16xf32>
    %65 = vector.multi_reduction <add>, %62, %cst_35 [1] : vector<16x16xf32> to vector<16xf32>
    %66 = vector.shape_cast %65 : vector<16xf32> to vector<16x1xf32>
    %cst_36 = arith.constant 1.600000e+01 : f32
    %67 = vector.broadcast %cst_36 : f32 to vector<16x1xf32>
    %68 = arith.divf %66, %67 : vector<16x1xf32>
    %69 = vector.broadcast %68 : vector<16x1xf32> to vector<16x16xf32>
    %70 = arith.subf %62, %69 : vector<16x16xf32>
    %71 = arith.mulf %70, %70 : vector<16x16xf32>
    %cst_37 = arith.constant dense<0.000000e+00> : vector<16xf32>
    %72 = vector.multi_reduction <add>, %71, %cst_37 [1] : vector<16x16xf32> to vector<16xf32>
    %73 = vector.shape_cast %72 : vector<16xf32> to vector<16x1xf32>
    %cst_38 = arith.constant 1.600000e+01 : f32
    %74 = vector.broadcast %cst_38 : f32 to vector<16x1xf32>
    %75 = arith.divf %73, %74 : vector<16x1xf32>
    %76 = vector.broadcast %68 : vector<16x1xf32> to vector<16x16xf32>
    %77 = arith.subf %62, %76 : vector<16x16xf32>
    %cst_39 = arith.constant 9.99999974E-6 : f32
    %78 = vector.broadcast %cst_39 : f32 to vector<16x1xf32>
    %79 = arith.addf %75, %78 : vector<16x1xf32>
    %80 = math.rsqrt %79 : vector<16x1xf32>
    %81 = vector.broadcast %80 : vector<16x1xf32> to vector<16x16xf32>
    %82 = arith.mulf %77, %81 : vector<16x16xf32>
    %83 = vector.broadcast %63 : vector<1x16xf32> to vector<16x16xf32>
    %84 = arith.mulf %82, %83 : vector<16x16xf32>
    %85 = vector.broadcast %64 : vector<1x16xf32> to vector<16x16xf32>
    %86 = arith.addf %84, %85 : vector<16x16xf32>
    %c64_40 = arith.constant 64 : index
    %c64_41 = arith.constant 64 : index
    %87 = vector.load %arg2[%c64_40, %c64_41] : memref<136x128xf32, #tpu.memory_space<vmem>>, vector<16x32xf32>
    %c113 = arith.constant 113 : index
    %c0_42 = arith.constant 0 : index
    %88 = vector.load %arg2[%c113, %c0_42] : memref<136x128xf32, #tpu.memory_space<vmem>>, vector<1x32xf32>
    %c80 = arith.constant 80 : index
    %c0_43 = arith.constant 0 : index
    %89 = vector.load %arg2[%c80, %c0_43] : memref<136x128xf32, #tpu.memory_space<vmem>>, vector<32x16xf32>
    %c115 = arith.constant 115 : index
    %c0_44 = arith.constant 0 : index
    %90 = vector.load %arg2[%c115, %c0_44] : memref<136x128xf32, #tpu.memory_space<vmem>>, vector<1x16xf32>
    %cst_45 = arith.constant dense<0.000000e+00> : vector<16x32xf32>
    %91 = tpu.matmul %86, %87, %cst_45 {dimension_numbers = #tpu.dot_dimension_numbers<[1], [0], [0], [1], [0, 0, 1, 1], [], []>} : vector<16x16xf32>, vector<16x32xf32>, vector<16x32xf32> -> vector<16x32xf32>
    %92 = vector.broadcast %88 : vector<1x32xf32> to vector<16x32xf32>
    %93 = arith.addf %91, %92 : vector<16x32xf32>
    %cst_46 = arith.constant 0.000000e+00 : f32
    %94 = vector.broadcast %cst_46 : f32 to vector<16x32xf32>
    %95 = arith.maximumf %93, %94 : vector<16x32xf32>
    %cst_47 = arith.constant dense<0.000000e+00> : vector<16x16xf32>
    %96 = tpu.matmul %95, %89, %cst_47 {dimension_numbers = #tpu.dot_dimension_numbers<[1], [0], [0], [1], [0, 0, 1, 1], [], []>} : vector<16x32xf32>, vector<32x16xf32>, vector<16x16xf32> -> vector<16x16xf32>
    %97 = vector.broadcast %90 : vector<1x16xf32> to vector<16x16xf32>
    %98 = arith.addf %96, %97 : vector<16x16xf32>
    %c118 = arith.constant 118 : index
    %c0_48 = arith.constant 0 : index
    %99 = vector.load %arg2[%c118, %c0_48] : memref<136x128xf32, #tpu.memory_space<vmem>>, vector<1x16xf32>
    %c119 = arith.constant 119 : index
    %c0_49 = arith.constant 0 : index
    %100 = vector.load %arg2[%c119, %c0_49] : memref<136x128xf32, #tpu.memory_space<vmem>>, vector<1x16xf32>
    %101 = arith.addf %86, %98 : vector<16x16xf32>
    %cst_50 = arith.constant dense<0.000000e+00> : vector<16xf32>
    %102 = vector.multi_reduction <add>, %101, %cst_50 [1] : vector<16x16xf32> to vector<16xf32>
    %103 = vector.shape_cast %102 : vector<16xf32> to vector<16x1xf32>
    %cst_51 = arith.constant 1.600000e+01 : f32
    %104 = vector.broadcast %cst_51 : f32 to vector<16x1xf32>
    %105 = arith.divf %103, %104 : vector<16x1xf32>
    %106 = vector.broadcast %105 : vector<16x1xf32> to vector<16x16xf32>
    %107 = arith.subf %101, %106 : vector<16x16xf32>
    %108 = arith.mulf %107, %107 : vector<16x16xf32>
    %cst_52 = arith.constant dense<0.000000e+00> : vector<16xf32>
    %109 = vector.multi_reduction <add>, %108, %cst_52 [1] : vector<16x16xf32> to vector<16xf32>
    %110 = vector.shape_cast %109 : vector<16xf32> to vector<16x1xf32>
    %cst_53 = arith.constant 1.600000e+01 : f32
    %111 = vector.broadcast %cst_53 : f32 to vector<16x1xf32>
    %112 = arith.divf %110, %111 : vector<16x1xf32>
    %113 = vector.broadcast %105 : vector<16x1xf32> to vector<16x16xf32>
    %114 = arith.subf %101, %113 : vector<16x16xf32>
    %cst_54 = arith.constant 9.99999974E-6 : f32
    %115 = vector.broadcast %cst_54 : f32 to vector<16x1xf32>
    %116 = arith.addf %112, %115 : vector<16x1xf32>
    %117 = math.rsqrt %116 : vector<16x1xf32>
    %118 = vector.broadcast %117 : vector<16x1xf32> to vector<16x16xf32>
    %119 = arith.mulf %114, %118 : vector<16x16xf32>
    %120 = vector.broadcast %99 : vector<1x16xf32> to vector<16x16xf32>
    %121 = arith.mulf %119, %120 : vector<16x16xf32>
    %122 = vector.broadcast %100 : vector<1x16xf32> to vector<16x16xf32>
    %123 = arith.addf %121, %122 : vector<16x16xf32>
    %124 = vector.extract_strided_slice %123 {offsets = [0, 0], sizes = [1, 16], strides = [1, 1]} : vector<16x16xf32> to vector<1x16xf32>
    %c0_55 = arith.constant 0 : index
    %c0_56 = arith.constant 0 : index
    %125 = vector.load %arg3[%c0_55, %c0_56] : memref<2x128xf32, #tpu.memory_space<vmem>>, vector<1x16xf32>
    tpu.vector_store %arg3[%c0_55, %c0_56], %124 {strides = array<i32>} : memref<2x128xf32, #tpu.memory_space<vmem>>, vector<1x16xf32>,
    %126 = vector.extract_strided_slice %123 {offsets = [1, 0], sizes = [1, 16], strides = [1, 1]} : vector<16x16xf32> to vector<1x16xf32>
    %c0_57 = arith.constant 0 : index
    %c16 = arith.constant 16 : index
    %127 = vector.load %arg3[%c0_57, %c16] : memref<2x128xf32, #tpu.memory_space<vmem>>, vector<1x16xf32>
    tpu.vector_store %arg3[%c0_57, %c16], %126 {strides = array<i32>} : memref<2x128xf32, #tpu.memory_space<vmem>>, vector<1x16xf32>,
    %128 = vector.extract_strided_slice %123 {offsets = [2, 0], sizes = [1, 16], strides = [1, 1]} : vector<16x16xf32> to vector<1x16xf32>
    %c0_58 = arith.constant 0 : index
    %c32 = arith.constant 32 : index
    %129 = vector.load %arg3[%c0_58, %c32] : memref<2x128xf32, #tpu.memory_space<vmem>>, vector<1x16xf32>
    tpu.vector_store %arg3[%c0_58, %c32], %128 {strides = array<i32>} : memref<2x128xf32, #tpu.memory_space<vmem>>, vector<1x16xf32>,
    %130 = vector.extract_strided_slice %123 {offsets = [3, 0], sizes = [1, 16], strides = [1, 1]} : vector<16x16xf32> to vector<1x16xf32>
    %c0_59 = arith.constant 0 : index
    %c48_60 = arith.constant 48 : index
    %131 = vector.load %arg3[%c0_59, %c48_60] : memref<2x128xf32, #tpu.memory_space<vmem>>, vector<1x16xf32>
    tpu.vector_store %arg3[%c0_59, %c48_60], %130 {strides = array<i32>} : memref<2x128xf32, #tpu.memory_space<vmem>>, vector<1x16xf32>,
    %132 = vector.extract_strided_slice %123 {offsets = [4, 0], sizes = [1, 16], strides = [1, 1]} : vector<16x16xf32> to vector<1x16xf32>
    %c0_61 = arith.constant 0 : index
    %c64_62 = arith.constant 64 : index
    %133 = vector.load %arg3[%c0_61, %c64_62] : memref<2x128xf32, #tpu.memory_space<vmem>>, vector<1x16xf32>
    tpu.vector_store %arg3[%c0_61, %c64_62], %132 {strides = array<i32>} : memref<2x128xf32, #tpu.memory_space<vmem>>, vector<1x16xf32>,
    %134 = vector.extract_strided_slice %123 {offsets = [5, 0], sizes = [1, 16], strides = [1, 1]} : vector<16x16xf32> to vector<1x16xf32>
    %c0_63 = arith.constant 0 : index
    %c80_64 = arith.constant 80 : index
    %135 = vector.load %arg3[%c0_63, %c80_64] : memref<2x128xf32, #tpu.memory_space<vmem>>, vector<1x16xf32>
    tpu.vector_store %arg3[%c0_63, %c80_64], %134 {strides = array<i32>} : memref<2x128xf32, #tpu.memory_space<vmem>>, vector<1x16xf32>,
    %136 = vector.extract_strided_slice %123 {offsets = [6, 0], sizes = [1, 16], strides = [1, 1]} : vector<16x16xf32> to vector<1x16xf32>
    %c0_65 = arith.constant 0 : index
    %c96 = arith.constant 96 : index
    %137 = vector.load %arg3[%c0_65, %c96] : memref<2x128xf32, #tpu.memory_space<vmem>>, vector<1x16xf32>
    tpu.vector_store %arg3[%c0_65, %c96], %136 {strides = array<i32>} : memref<2x128xf32, #tpu.memory_space<vmem>>, vector<1x16xf32>,
    %138 = vector.extract_strided_slice %123 {offsets = [7, 0], sizes = [1, 16], strides = [1, 1]} : vector<16x16xf32> to vector<1x16xf32>
    %c0_66 = arith.constant 0 : index
    %c112_67 = arith.constant 112 : index
    %139 = vector.load %arg3[%c0_66, %c112_67] : memref<2x128xf32, #tpu.memory_space<vmem>>, vector<1x16xf32>
    tpu.vector_store %arg3[%c0_66, %c112_67], %138 {strides = array<i32>} : memref<2x128xf32, #tpu.memory_space<vmem>>, vector<1x16xf32>,
    %140 = vector.extract_strided_slice %123 {offsets = [8, 0], sizes = [1, 16], strides = [1, 1]} : vector<16x16xf32> to vector<1x16xf32>
    %c1_68 = arith.constant 1 : index
    %c0_69 = arith.constant 0 : index
    %141 = vector.load %arg3[%c1_68, %c0_69] : memref<2x128xf32, #tpu.memory_space<vmem>>, vector<1x16xf32>
    tpu.vector_store %arg3[%c1_68, %c0_69], %140 {strides = array<i32>} : memref<2x128xf32, #tpu.memory_space<vmem>>, vector<1x16xf32>,
    %142 = vector.extract_strided_slice %123 {offsets = [9, 0], sizes = [1, 16], strides = [1, 1]} : vector<16x16xf32> to vector<1x16xf32>
    %c1_70 = arith.constant 1 : index
    %c16_71 = arith.constant 16 : index
    %143 = vector.load %arg3[%c1_70, %c16_71] : memref<2x128xf32, #tpu.memory_space<vmem>>, vector<1x16xf32>
    tpu.vector_store %arg3[%c1_70, %c16_71], %142 {strides = array<i32>} : memref<2x128xf32, #tpu.memory_space<vmem>>, vector<1x16xf32>,
    %144 = vector.extract_strided_slice %123 {offsets = [10, 0], sizes = [1, 16], strides = [1, 1]} : vector<16x16xf32> to vector<1x16xf32>
    %c1_72 = arith.constant 1 : index
    %c32_73 = arith.constant 32 : index
    %145 = vector.load %arg3[%c1_72, %c32_73] : memref<2x128xf32, #tpu.memory_space<vmem>>, vector<1x16xf32>
    tpu.vector_store %arg3[%c1_72, %c32_73], %144 {strides = array<i32>} : memref<2x128xf32, #tpu.memory_space<vmem>>, vector<1x16xf32>,
    %146 = vector.extract_strided_slice %123 {offsets = [11, 0], sizes = [1, 16], strides = [1, 1]} : vector<16x16xf32> to vector<1x16xf32>
    %c1_74 = arith.constant 1 : index
    %c48_75 = arith.constant 48 : index
    %147 = vector.load %arg3[%c1_74, %c48_75] : memref<2x128xf32, #tpu.memory_space<vmem>>, vector<1x16xf32>
    tpu.vector_store %arg3[%c1_74, %c48_75], %146 {strides = array<i32>} : memref<2x128xf32, #tpu.memory_space<vmem>>, vector<1x16xf32>,
    %148 = vector.extract_strided_slice %123 {offsets = [12, 0], sizes = [1, 16], strides = [1, 1]} : vector<16x16xf32> to vector<1x16xf32>
    %c1_76 = arith.constant 1 : index
    %c64_77 = arith.constant 64 : index
    %149 = vector.load %arg3[%c1_76, %c64_77] : memref<2x128xf32, #tpu.memory_space<vmem>>, vector<1x16xf32>
    tpu.vector_store %arg3[%c1_76, %c64_77], %148 {strides = array<i32>} : memref<2x128xf32, #tpu.memory_space<vmem>>, vector<1x16xf32>,
    %150 = vector.extract_strided_slice %123 {offsets = [13, 0], sizes = [1, 16], strides = [1, 1]} : vector<16x16xf32> to vector<1x16xf32>
    %c1_78 = arith.constant 1 : index
    %c80_79 = arith.constant 80 : index
    %151 = vector.load %arg3[%c1_78, %c80_79] : memref<2x128xf32, #tpu.memory_space<vmem>>, vector<1x16xf32>
    tpu.vector_store %arg3[%c1_78, %c80_79], %150 {strides = array<i32>} : memref<2x128xf32, #tpu.memory_space<vmem>>, vector<1x16xf32>,
    %152 = vector.extract_strided_slice %123 {offsets = [14, 0], sizes = [1, 16], strides = [1, 1]} : vector<16x16xf32> to vector<1x16xf32>
    %c1_80 = arith.constant 1 : index
    %c96_81 = arith.constant 96 : index
    %153 = vector.load %arg3[%c1_80, %c96_81] : memref<2x128xf32, #tpu.memory_space<vmem>>, vector<1x16xf32>
    tpu.vector_store %arg3[%c1_80, %c96_81], %152 {strides = array<i32>} : memref<2x128xf32, #tpu.memory_space<vmem>>, vector<1x16xf32>,
    %154 = vector.extract_strided_slice %123 {offsets = [15, 0], sizes = [1, 16], strides = [1, 1]} : vector<16x16xf32> to vector<1x16xf32>
    %c1_82 = arith.constant 1 : index
    %c112_83 = arith.constant 112 : index
    %155 = vector.load %arg3[%c1_82, %c112_83] : memref<2x128xf32, #tpu.memory_space<vmem>>, vector<1x16xf32>
    tpu.vector_store %arg3[%c1_82, %c112_83], %154 {strides = array<i32>} : memref<2x128xf32, #tpu.memory_space<vmem>>, vector<1x16xf32>,
    return
  }
  func.func @transform_0(%arg0: i32) -> (i32, i32) {
    %c0_i32 = arith.constant 0 : i32
    %c0_i32_0 = arith.constant 0 : i32
    %c0_i32_1 = arith.constant 0 : i32
    return %c0_i32, %c0_i32_0 : i32, i32
  }
  func.func @transform_1(%arg0: i32) -> (i32, i32) {
    %c0_i32 = arith.constant 0 : i32
    %c0_i32_0 = arith.constant 0 : i32
    %c0_i32_1 = arith.constant 0 : i32
    return %c0_i32, %c0_i32_0 : i32, i32
  }
  func.func @transform_2(%arg0: i32) -> (i32, i32) {
    %c0_i32 = arith.constant 0 : i32
    %c0_i32_0 = arith.constant 0 : i32
    %c0_i32_1 = arith.constant 0 : i32
    return %c0_i32, %c0_i32_0 : i32, i32
  }
}

</mosaic_0001>

<llo_original>
// kernel: tpu_custom_call.1
$region0: #{tpu_custom_call.1}
  #allocation0 [shape = 'u32[]', space=smem, size = 0x4, offset = 0x4, fixed_abs, tag = 'smem constant byte address 0x4 - core index']
  #allocation1 [shape = 'u32[72,128]{1,0:T(1,128)}', space=vmem, size = 0x9000, scoped, tag = 'internal scratch']
  #allocation2 [shape = 'f32[16,16]{1,0:T(8,128)}', space=vmem, size = 0x2000, scoped, tag = 'scratch operand']
  %s0 = inlined_call_operand.hbm [shape: f32[2,64], index: 0, kind: input, shape index: {}]
  %s1 = inlined_call_operand.hbm [shape: f32[136,128], index: 1, kind: input, shape index: {}]
  %s2 = inlined_call_operand.hbm [shape: f32[2,128], index: 2, kind: output, shape index: {}]
  %s3 = sld [smem:[#allocation0]]
  $region26: #{tpu_custom_call.1} parent=0
    _
  %s5 = ssub.s32 1, %s3
  %s6 = scalar_select 0, %s5, %s3
  $region1: #{tpu_custom_call.1} parent=0
    #allocation3 [shape = 'u8[1024]{0}', space=vmem, size = 0x400, scoped, tag = 'input window, operand 0, single buffered']
    #allocation4 [shape = 's32[1]{0}', space=sflag, size = 0x4, scoped, tag = 'scoped memory for tpu_custom_call.1']
    #allocation5 [shape = 's32[1]{0}', space=sflag, size = 0x4, scoped, tag = 'scoped memory for tpu_custom_call.1']
    #allocation6 [shape = 'u8[69632]{0}', space=vmem, size = 0x11000, scoped, tag = 'input window, operand 1, single buffered']
    #allocation7 [shape = 's32[1]{0}', space=sflag, size = 0x4, scoped, tag = 'scoped memory for tpu_custom_call.1']
    #allocation8 [shape = 'u8[1024]{0}', space=vmem, size = 0x400, scoped, tag = 'output window, operand 0, single buffered']
    %7 = vsyncpa [#allocation4], 0
    %8 = vsyncpa [#allocation7], 0
    %9 = vsyncpa [#allocation5], 0
    // Predicated region
    $region2: #{tpu_custom_call.1} parent=1 // pred_check
      _
    $region3: #{tpu_custom_call.1} parent=1 // pred_check_branch
      %11 = sbr.rel (0) target = $region5
    $region4: #{tpu_custom_call.1} parent=1 // pred_region
      %13 = vsyncadd [#allocation4], 0
      %s15 = sshll.u32 %s0, 4
      %s16 = int_to_ptr.hbm [resolvable:$true] %s15
      %s17 = sshll.u32 [#allocation3], 4
      %s18 = int_to_ptr.vmem [resolvable:$true] %s17
      %20 = dma.hbm_to_vmem [thread:$0]  %s16, 32, %s18, [#allocation4]
    $region5: #{tpu_custom_call.1} parent=1 // pred_fallthru
      _
    // Predicated region
    $region6: #{tpu_custom_call.1} parent=1 // pred_check
      _
    $region7: #{tpu_custom_call.1} parent=1 // pred_check_branch
      %22 = sbr.rel (0) target = $region9
    $region8: #{tpu_custom_call.1} parent=1 // pred_region
      %24 = vsyncadd [#allocation7], 0
      %s25 = sshll.u32 %s1, 4
      %s26 = int_to_ptr.hbm [resolvable:$true] %s25
      %s27 = sshll.u32 [#allocation6], 4
      %s28 = int_to_ptr.vmem [resolvable:$true] %s27
      %33 = dma.hbm_to_vmem [thread:$0]  %s26, 2176, %s28, [#allocation7], 128, 128, 8
    $region9: #{tpu_custom_call.1} parent=1 // pred_fallthru
      _
    // Predicated region
    $region10: #{tpu_custom_call.1} parent=1 // pred_check
      _
    $region11: #{tpu_custom_call.1} parent=1 // pred_check_branch
      %35 = sbr.rel (0) target = $region13
    $region12: #{tpu_custom_call.1} parent=1 // pred_region
      %37 = dma.done [#allocation4], 32
    $region13: #{tpu_custom_call.1} parent=1 // pred_fallthru
      _
    // Predicated region
    $region14: #{tpu_custom_call.1} parent=1 // pred_check
      _
    $region15: #{tpu_custom_call.1} parent=1 // pred_check_branch
      %39 = sbr.rel (0) target = $region17
    $region16: #{tpu_custom_call.1} parent=1 // pred_region
      %41 = dma.done [#allocation7], 2176
    $region17: #{tpu_custom_call.1} parent=1 // pred_fallthru
      _
    %v42 = vld [vmem:[#allocation3] sm:$0x3]
    %v43 = vld [vmem:[#allocation6] sm:$0xff]
    %v44 = vld [vmem:[#allocation6 + $0x8] sm:$0xff]
    %v45 = vld [vmem:[#allocation6 + $0x10] sm:$0xff]
    %v46 = vld [vmem:[#allocation6 + $0x18] sm:$0xff]
    %v47 = vld [vmem:[#allocation6 + $0x20] sm:$0xff]
    %v48 = vld [vmem:[#allocation6 + $0x28] sm:$0xff]
    %v49 = vld [vmem:[#allocation6 + $0x30] sm:$0xff]
    %v50 = vld [vmem:[#allocation6 + $0x38] sm:$0xff]
    %vm51 = vcmask 523264
    %v53 = vsel %vm51, %v42, 0
    %55 = vmatpush.msra.mxu0 0.0
    %56 = vmatpush.msra.mxu0 0.0
    %57 = vmatpush.msra.mxu0 0.0
    %58 = vmatpush.msra.mxu0 0.0
    %59 = vmatpush.msra.mxu0 0.0
    %60 = vmatpush.msra.mxu0 0.0
    %61 = vmatpush.msra.mxu0 0.0
    %62 = vmatpush.msra.mxu0 0.0
    %63 = vmatpush.msra.mxu0 %v50
    %64 = vmatpush.msra.mxu0 %v49
    %65 = vmatpush.msra.mxu0 %v48
    %66 = vmatpush.msra.mxu0 %v47
    %67 = vmatpush.msra.mxu0 %v46
    %68 = vmatpush.msra.mxu0 %v45
    %69 = vmatpush.msra.mxu0 %v44
    %70 = vmatpush.msra.mxu0 %v43
    %71 = vmatmul.f32.gmra.mxu0 %v53
    %v72 = vpop.f32.mrf.mxu0
    %v73 = vadd.f32 0.0, %v72
    %74 = vdwg.mxu0
    %vm75 = vcmask 122880
    %76 = vst.msk [vmem:[#allocation2] sm:$0x1] %vm75, %v73
    %78 = vrot.lane.b32.xlu0 %v73, 112
    %v79 = vpop.permute.xlu0 %78
    %81 = vst.msk [vmem:[#allocation2 + $0x1] sm:$0x1] %vm75, %v79
    %82 = vrot.lane.b32.xlu0 %v73, 96
    %v83 = vpop.permute.xlu0 %82
    %85 = vst.msk [vmem:[#allocation2 + $0x2] sm:$0x1] %vm75, %v83
    %86 = vrot.lane.b32.xlu0 %v73, 80
    %v87 = vpop.permute.xlu0 %86
    %89 = vst.msk [vmem:[#allocation2 + $0x3] sm:$0x1] %vm75, %v87
    %90 = vrot.lane.b32.xlu0 %v73, 64
    %v91 = vpop.permute.xlu0 %90
    %93 = vst.msk [vmem:[#allocation2 + $0x4] sm:$0x1] %vm75, %v91
    %94 = vrot.lane.b32.xlu0 %v73, 48
    %v95 = vpop.permute.xlu0 %94
    %97 = vst.msk [vmem:[#allocation2 + $0x5] sm:$0x1] %vm75, %v95
    %98 = vrot.lane.b32.xlu0 %v73, 32
    %v99 = vpop.permute.xlu0 %98
    %101 = vst.msk [vmem:[#allocation2 + $0x6] sm:$0x1] %vm75, %v99
    %102 = vrot.lane.b32.xlu0 %v73, 16
    %v103 = vpop.permute.xlu0 %102
    %105 = vst.msk [vmem:[#allocation2 + $0x7] sm:$0x1] %vm75, %v103
    %vm106 = vcmask 123905
    %107 = vst.msk [vmem:[#allocation2 + $0x7] sm:$0x2] %vm106, %v73
    %108 = vst.msk [vmem:[#allocation2 + $0x8] sm:$0x2] %vm106, %v79
    %109 = vst.msk [vmem:[#allocation2 + $0x9] sm:$0x2] %vm106, %v83
    %110 = vst.msk [vmem:[#allocation2 + $0xa] sm:$0x2] %vm106, %v87
    %111 = vst.msk [vmem:[#allocation2 + $0xb] sm:$0x2] %vm106, %v91
    %112 = vst.msk [vmem:[#allocation2 + $0xc] sm:$0x2] %vm106, %v95
    %113 = vst.msk [vmem:[#allocation2 + $0xd] sm:$0x2] %vm106, %v99
    %114 = vst.msk [vmem:[#allocation2 + $0xe] sm:$0x2] %vm106, %v103
    %v115 = vld [vmem:[#allocation2] sm:$0xff]
    %v116 = vld [vmem:[#allocation2 + $0x8] sm:$0xff]
    %v117 = vld [vmem:[#allocation6 + $0x40] sm:$0xff]
    %v118 = vld [vmem:[#allocation6 + $0x48] sm:$0xff]
    %v119 = vld [vmem:[#allocation6 + $0x70] sm:$0x1]
    %v120 = vperm.slane %v119, 0
    %vm121 = vcmask 130048
    %v123 = vsel %vm121, %v115, 0
    %v126 = vsel %vm121, %v116, 0
    %128 = vmatpush.msra.mxu0 0.0
    %129 = vmatpush.msra.mxu0 0.0
    %130 = vmatpush.msra.mxu0 0.0
    %131 = vmatpush.msra.mxu0 0.0
    %132 = vmatpush.msra.mxu0 0.0
    %133 = vmatpush.msra.mxu0 0.0
    %134 = vmatpush.msra.mxu0 0.0
    %135 = vmatpush.msra.mxu0 0.0
    %136 = vmatpush.msra.mxu0 0.0
    %137 = vmatpush.msra.mxu0 0.0
    %138 = vmatpush.msra.mxu0 0.0
    %139 = vmatpush.msra.mxu0 0.0
    %140 = vmatpush.msra.mxu0 0.0
    %141 = vmatpush.msra.mxu0 0.0
    %142 = vmatpush.msra.mxu0 %v118
    %143 = vmatpush.msra.mxu0 %v117
    %144 = vmatmul.f32.gmra.mxu0 %v123
    %v145 = vpop.f32.mrf.mxu0
    %v146 = vadd.f32 %v120, %v145
    %147 = vmatmul.f32.gmra.mxu0 %v126
    %v148 = vpop.f32.mrf.mxu0
    %v149 = vadd.f32 %v120, %v148
    %150 = vdwg.mxu0
    %v151 = vld [vmem:[#allocation6 + $0x78] sm:$0xff]
    %v152 = vld [vmem:[#allocation6 + $0x80] sm:$0xff]
    %155 = vrot.lane.b32.xlu0 %v146, 112
    %v156 = vpop.permute.xlu0 %155
    %157 = vrot.lane.b32.xlu0 %v149, 112
    %v158 = vpop.permute.xlu0 %157
    %v159 = vsel %vm121, %v146, 0
    %v161 = vsel %vm121, %v149, 0
    %v163 = vsel %vm121, %v156, 0
    %v165 = vsel %vm121, %v158, 0
    %167 = vmatpush.xpose.msra.mxu0 0.0
    %168 = vmatpush.xpose.msra.mxu0 0.0
    %169 = vmatpush.xpose.msra.mxu0 0.0
    %170 = vmatpush.xpose.msra.mxu0 0.0
    %171 = vmatpush.xpose.msra.mxu0 0.0
    %172 = vmatpush.xpose.msra.mxu0 0.0
    %173 = vmatpush.xpose.msra.mxu0 0.0
    %174 = vmatpush.xpose.msra.mxu0 0.0
    %175 = vmatpush.xpose.msra.mxu0 0.0
    %176 = vmatpush.xpose.msra.mxu0 0.0
    %177 = vmatpush.xpose.msra.mxu0 0.0
    %178 = vmatpush.xpose.msra.mxu0 0.0
    %179 = vmatpush.xpose.msra.mxu0 0.0
    %180 = vmatpush.xpose.msra.mxu0 0.0
    %181 = vmatpush.xpose.msra.mxu0 %v165
    %182 = vmatpush.xpose.msra.mxu0 %v163
    %183 = vmatmul.f32.gmra.mxu0 %v159
    %v184 = vpop.f32.mrf.mxu0
    %v185 = vadd.f32 %v151, %v184
    %186 = vmatmul.f32.gmra.mxu0 %v161
    %v187 = vpop.f32.mrf.mxu0
    %v188 = vadd.f32 %v152, %v187
    %189 = vdwg.mxu0
    %v190 = vsel %vm121, %v185, -inf
    %191 = vmax.xlane.f32.xlu0 %v190
    %v192 = vpop.xlane.xlu0 %191
    %v193 = vsel %vm121, %v188, -inf
    %194 = vmax.xlane.f32.xlu0 %v193
    %v195 = vpop.xlane.xlu0 %194
    %v196 = vsub.f32 %v185, %v192
    %v197 = vsub.f32 %v188, %v195
    %v198 = vmul.f32 %v196, 1.442695
    %v199 = vpow.pop %v198
    %v200 = vmul.f32 %v197, 1.442695
    %v201 = vpow.pop %v200
    %v202 = vsel %vm121, %v199, 0.0
    %203 = vadd.xlane.f32.xlu0 %v202
    %v204 = vpop.xlane.xlu0 %203
    %v205 = vsel %vm121, %v201, 0.0
    %206 = vadd.xlane.f32.xlu0 %v205
    %v207 = vpop.xlane.xlu0 %206
    %v208 = vrcp.pop %v204
    %v209 = vmul.f32 %v204, %v208
    %v210 = vsub.f32 1.0, %v209
    %v211 = vmul.f32 %v208, %v210
    %v212 = vadd.f32 %v208, %v211
    %vm213 = vweird.f32 %v204
    %vm214 = vweird.f32 %v208
    %vm215 = vmor %vm213, %vm214
    %v216 = vsel %vm215, %v208, %v212
    %v217 = vand.u32 2147483647, %v204
    %vm218 = vcmp.eq.f32.partialorder %v217, 8.507059e+37
    %v219 = vand.u32 %v204, 2147483648
    %v220 = vor.u32 1.1754944e-38, %v219
    %v221 = vsel %vm218, %v220, %v216
    %v222 = vmul.f32 %v199, %v221
    %v223 = vrcp.pop %v207
    %v224 = vmul.f32 %v207, %v223
    %v225 = vsub.f32 1.0, %v224
    %v226 = vmul.f32 %v223, %v225
    %v227 = vadd.f32 %v223, %v226
    %vm228 = vweird.f32 %v207
    %vm229 = vweird.f32 %v223
    %vm230 = vmor %vm228, %vm229
    %v231 = vsel %vm230, %v223, %v227
    %v232 = vand.u32 2147483647, %v207
    %vm233 = vcmp.eq.f32.partialorder %v232, 8.507059e+37
    %v234 = vand.u32 %v207, 2147483648
    %v235 = vor.u32 1.1754944e-38, %v234
    %v236 = vsel %vm233, %v235, %v231
    %v237 = vmul.f32 %v201, %v236
    %238 = vrot.lane.b32.xlu0 %v146, 96
    %v239 = vpop.permute.xlu0 %238
    %240 = vrot.lane.b32.xlu0 %v149, 96
    %v241 = vpop.permute.xlu0 %240
    %v245 = vsel %vm121, %v222, 0
    %v248 = vsel %vm121, %v237, 0
    %250 = vmatpush.msra.mxu0 0.0
    %251 = vmatpush.msra.mxu0 0.0
    %252 = vmatpush.msra.mxu0 0.0
    %253 = vmatpush.msra.mxu0 0.0
    %254 = vmatpush.msra.mxu0 0.0
    %255 = vmatpush.msra.mxu0 0.0
    %256 = vmatpush.msra.mxu0 0.0
    %257 = vmatpush.msra.mxu0 0.0
    %258 = vmatpush.msra.mxu0 0.0
    %259 = vmatpush.msra.mxu0 0.0
    %260 = vmatpush.msra.mxu0 0.0
    %261 = vmatpush.msra.mxu0 0.0
    %262 = vmatpush.msra.mxu0 0.0
    %263 = vmatpush.msra.mxu0 0.0
    %264 = vmatpush.msra.mxu0 %v241
    %265 = vmatpush.msra.mxu0 %v239
    %266 = vmatmul.f32.gmra.mxu0 %v245
    %v267 = vpop.f32.mrf.mxu0
    %v268 = vadd.f32 0.0, %v267
    %269 = vmatmul.f32.gmra.mxu0 %v248
    %v270 = vpop.f32.mrf.mxu0
    %v271 = vadd.f32 0.0, %v270
    %272 = vdwg.mxu0
    %v273 = vld [vmem:[#allocation6 + $0x72] sm:$0x1]
    %276 = vrot.lane.b32.xlu0 %v117, 80
    %v277 = vpop.permute.xlu0 %276
    %278 = vrot.lane.b32.xlu0 %v118, 80
    %v279 = vpop.permute.xlu0 %278
    %v283 = vsel %vm121, %v268, 0
    %v286 = vsel %vm121, %v271, 0
    %288 = vmatpush.msra.mxu0 0.0
    %289 = vmatpush.msra.mxu0 0.0
    %290 = vmatpush.msra.mxu0 0.0
    %291 = vmatpush.msra.mxu0 0.0
    %292 = vmatpush.msra.mxu0 0.0
    %293 = vmatpush.msra.mxu0 0.0
    %294 = vmatpush.msra.mxu0 0.0
    %295 = vmatpush.msra.mxu0 0.0
    %296 = vmatpush.msra.mxu0 0.0
    %297 = vmatpush.msra.mxu0 0.0
    %298 = vmatpush.msra.mxu0 0.0
    %299 = vmatpush.msra.mxu0 0.0
    %300 = vmatpush.msra.mxu0 0.0
    %301 = vmatpush.msra.mxu0 0.0
    %302 = vmatpush.msra.mxu0 %v279
    %303 = vmatpush.msra.mxu0 %v277
    %304 = vmatmul.f32.gmra.mxu0 %v283
    %v305 = vpop.f32.mrf.mxu0
    %v306 = vadd.f32 0.0, %v305
    %307 = vmatmul.f32.gmra.mxu0 %v286
    %v308 = vpop.f32.mrf.mxu0
    %v309 = vadd.f32 0.0, %v308
    %310 = vdwg.mxu0
    %v311 = vadd.f32 %v115, %v306
    %v312 = vadd.f32 %v116, %v309
    %v313 = vperm.slane %v273, 0
    %v314 = vadd.f32 %v311, %v313
    %v315 = vadd.f32 %v312, %v313
    %v316 = vld [vmem:[#allocation6 + $0x74] sm:$0x1]
    %v317 = vld [vmem:[#allocation6 + $0x75] sm:$0x1]
    %v318 = vsel %vm121, %v314, 0.0
    %319 = vadd.xlane.f32.xlu0 %v318
    %v320 = vpop.xlane.xlu0 %319
    %v321 = vsel %vm121, %v315, 0.0
    %322 = vadd.xlane.f32.xlu0 %v321
    %v323 = vpop.xlane.xlu0 %322
    %v324 = vrcp.pop 16.0
    %v325 = vmul.f32 16.0, %v324
    %v326 = vsub.f32 1.0, %v325
    %v327 = vmul.f32 %v324, %v326
    %v328 = vadd.f32 %v324, %v327
    %vm329 = vweird.f32 %v324
    %v330 = vsel %vm329, %v324, %v328
    %v331 = vmul.f32 %v320, %v330
    %v332 = vmul.f32 %v323, %v330
    %v333 = vsub.f32 %v314, %v331
    %v334 = vsub.f32 %v315, %v332
    %v335 = vmul.f32 %v333, %v333
    %v336 = vmul.f32 %v334, %v334
    %v337 = vsel %vm121, %v335, 0.0
    %338 = vadd.xlane.f32.xlu0 %v337
    %v339 = vpop.xlane.xlu0 %338
    %v340 = vsel %vm121, %v336, 0.0
    %341 = vadd.xlane.f32.xlu0 %v340
    %v342 = vpop.xlane.xlu0 %341
    %v343 = vmul.f32 %v339, %v330
    %v344 = vmul.f32 %v342, %v330
    %v345 = vadd.f32 %v343, 1e-05
    %v346 = vadd.f32 %v344, 1e-05
    %v347 = vrsqrt.pop %v345
    %v348 = vmul.f32 %v347, %v345
    %v349 = vmul.f32 %v348, %v347
    %v350 = vmul.f32 0.5, %v349
    %v351 = vsub.f32 1.5, %v350
    %v352 = vmul.f32 %v347, %v351
    %vm353 = vweird.f32 %v345
    %vm354 = vweird.f32 %v347
    %vm355 = vmor %vm353, %vm354
    %v356 = vsel %vm355, %v347, %v352
    %v357 = vrsqrt.pop %v346
    %v358 = vmul.f32 %v357, %v346
    %v359 = vmul.f32 %v358, %v357
    %v360 = vmul.f32 0.5, %v359
    %v361 = vsub.f32 1.5, %v360
    %v362 = vmul.f32 %v357, %v361
    %vm363 = vweird.f32 %v346
    %vm364 = vweird.f32 %v357
    %vm365 = vmor %vm363, %vm364
    %v366 = vsel %vm365, %v357, %v362
    %v367 = vmul.f32 %v333, %v356
    %v368 = vmul.f32 %v334, %v366
    %v369 = vperm.slane %v316, 0
    %v370 = vmul.f32 %v367, %v369
    %v371 = vmul.f32 %v368, %v369
    %v372 = vperm.slane %v317, 0
    %v373 = vadd.f32 %v370, %v372
    %v374 = vadd.f32 %v371, %v372
    %v375 = vld [vmem:[#allocation6 + $0x71] sm:$0x1]
    %v376 = vld [vmem:[#allocation6 + $0x50] sm:$0xff]
    %v377 = vld [vmem:[#allocation6 + $0x58] sm:$0xff]
    %v378 = vld [vmem:[#allocation6 + $0x60] sm:$0xff]
    %v379 = vld [vmem:[#allocation6 + $0x68] sm:$0xff]
    %v380 = vld [vmem:[#allocation6 + $0x73] sm:$0x1]
    %v381 = vperm.slane %v375, 0
    %382 = vrot.lane.b32.xlu0 %v117, 64
    %v383 = vpop.permute.xlu0 %382
    %384 = vrot.lane.b32.xlu0 %v118, 64
    %v385 = vpop.permute.xlu0 %384
    %v389 = vsel %vm121, %v373, 0
    %v392 = vsel %vm121, %v374, 0
    %394 = vmatpush.msra.mxu0 0.0
    %395 = vmatpush.msra.mxu0 0.0
    %396 = vmatpush.msra.mxu0 0.0
    %397 = vmatpush.msra.mxu0 0.0
    %398 = vmatpush.msra.mxu0 0.0
    %399 = vmatpush.msra.mxu0 0.0
    %400 = vmatpush.msra.mxu0 0.0
    %401 = vmatpush.msra.mxu0 0.0
    %402 = vmatpush.msra.mxu0 0.0
    %403 = vmatpush.msra.mxu0 0.0
    %404 = vmatpush.msra.mxu0 0.0
    %405 = vmatpush.msra.mxu0 0.0
    %406 = vmatpush.msra.mxu0 0.0
    %407 = vmatpush.msra.mxu0 0.0
    %408 = vmatpush.msra.mxu0 %v385
    %409 = vmatpush.msra.mxu0 %v383
    %410 = vmatmul.f32.gmra.mxu0 %v389
    %v411 = vpop.f32.mrf.mxu0
    %v412 = vadd.f32 %v381, %v411
    %413 = vmatmul.f32.gmra.mxu0 %v392
    %v414 = vpop.f32.mrf.mxu0
    %v415 = vadd.f32 %v381, %v414
    %416 = vdwg.mxu0
    %v417 = vmax.f32 %v412, 0.0
    %v418 = vmax.f32 %v415, 0.0
    %v419 = vperm.slane %v380, 0
    %vm420 = vcmask 261120
    %v422 = vsel %vm420, %v417, 0
    %v425 = vsel %vm420, %v418, 0
    %427 = vmatpush.msra.mxu0 0.0
    %428 = vmatpush.msra.mxu0 0.0
    %429 = vmatpush.msra.mxu0 0.0
    %430 = vmatpush.msra.mxu0 0.0
    %431 = vmatpush.msra.mxu0 0.0
    %432 = vmatpush.msra.mxu0 0.0
    %433 = vmatpush.msra.mxu0 0.0
    %434 = vmatpush.msra.mxu0 0.0
    %435 = vmatpush.msra.mxu0 0.0
    %436 = vmatpush.msra.mxu0 0.0
    %437 = vmatpush.msra.mxu0 0.0
    %438 = vmatpush.msra.mxu0 0.0
    %439 = vmatpush.msra.mxu0 %v379
    %440 = vmatpush.msra.mxu0 %v378
    %441 = vmatpush.msra.mxu0 %v377
    %442 = vmatpush.msra.mxu0 %v376
    %443 = vmatmul.f32.gmra.mxu0 %v422
    %v444 = vpop.f32.mrf.mxu0
    %v445 = vadd.f32 %v419, %v444
    %446 = vmatmul.f32.gmra.mxu0 %v425
    %v447 = vpop.f32.mrf.mxu0
    %v448 = vadd.f32 %v419, %v447
    %449 = vdwg.mxu0
    %v450 = vld [vmem:[#allocation6 + $0x76] sm:$0x1]
    %v451 = vld [vmem:[#allocation6 + $0x77] sm:$0x1]
    %v452 = vadd.f32 %v373, %v445
    %v453 = vadd.f32 %v374, %v448
    %v454 = vsel %vm121, %v452, 0.0
    %455 = vadd.xlane.f32.xlu0 %v454
    %v456 = vpop.xlane.xlu0 %455
    %v457 = vsel %vm121, %v453, 0.0
    %458 = vadd.xlane.f32.xlu0 %v457
    %v459 = vpop.xlane.xlu0 %458
    %v460 = vmul.f32 %v456, %v330
    %v461 = vmul.f32 %v459, %v330
    %v462 = vsub.f32 %v452, %v460
    %v463 = vsub.f32 %v453, %v461
    %v464 = vmul.f32 %v462, %v462
    %v465 = vmul.f32 %v463, %v463
    %v466 = vsel %vm121, %v464, 0.0
    %467 = vadd.xlane.f32.xlu0 %v466
    %v468 = vpop.xlane.xlu0 %467
    %v469 = vsel %vm121, %v465, 0.0
    %470 = vadd.xlane.f32.xlu0 %v469
    %v471 = vpop.xlane.xlu0 %470
    %v472 = vmul.f32 %v468, %v330
    %v473 = vmul.f32 %v471, %v330
    %v474 = vadd.f32 %v472, 1e-05
    %v475 = vadd.f32 %v473, 1e-05
    %v476 = vrsqrt.pop %v474
    %v477 = vmul.f32 %v476, %v474
    %v478 = vmul.f32 %v477, %v476
    %v479 = vmul.f32 0.5, %v478
    %v480 = vsub.f32 1.5, %v479
    %v481 = vmul.f32 %v476, %v480
    %vm482 = vweird.f32 %v474
    %vm483 = vweird.f32 %v476
    %vm484 = vmor %vm482, %vm483
    %v485 = vsel %vm484, %v476, %v481
    %v486 = vrsqrt.pop %v475
    %v487 = vmul.f32 %v486, %v475
    %v488 = vmul.f32 %v487, %v486
    %v489 = vmul.f32 0.5, %v488
    %v490 = vsub.f32 1.5, %v489
    %v491 = vmul.f32 %v486, %v490
    %vm492 = vweird.f32 %v475
    %vm493 = vweird.f32 %v486
    %vm494 = vmor %vm492, %vm493
    %v495 = vsel %vm494, %v486, %v491
    %v496 = vmul.f32 %v462, %v485
    %v497 = vmul.f32 %v463, %v495
    %v498 = vperm.slane %v450, 0
    %v499 = vmul.f32 %v496, %v498
    %v500 = vmul.f32 %v497, %v498
    %v501 = vperm.slane %v451, 0
    %v502 = vadd.f32 %v499, %v501
    %v503 = vadd.f32 %v500, %v501
    %504 = vst.msk [vmem:[#allocation8] sm:$0x1] %vm75, %v502
    %506 = vrot.lane.b32.xlu0 %v502, 16
    %v507 = vpop.permute.xlu0 %506
    %vm509 = vcmask 255105
    %510 = vst.msk [vmem:[#allocation8 - $0x1] sm:$0x2] %vm509, %v507
    %511 = vrot.lane.b32.xlu0 %v502, 32
    %v512 = vpop.permute.xlu0 %511
    %vm514 = vcmask 387330
    %515 = vst.msk [vmem:[#allocation8 - $0x2] sm:$0x4] %vm514, %v512
    %516 = vrot.lane.b32.xlu0 %v502, 48
    %v517 = vpop.permute.xlu0 %516
    %vm519 = vcmask 519555
    %520 = vst.msk [vmem:[#allocation8 - $0x3] sm:$0x8] %vm519, %v517
    %521 = vrot.lane.b32.xlu0 %v502, 64
    %v522 = vpop.permute.xlu0 %521
    %vm524 = vcmask 651780
    %525 = vst.msk [vmem:[#allocation8 - $0x4] sm:$0x10] %vm524, %v522
    %526 = vrot.lane.b32.xlu0 %v502, 80
    %v527 = vpop.permute.xlu0 %526
    %vm529 = vcmask 784005
    %530 = vst.msk [vmem:[#allocation8 - $0x5] sm:$0x20] %vm529, %v527
    %531 = vrot.lane.b32.xlu0 %v502, 96
    %v532 = vpop.permute.xlu0 %531
    %vm534 = vcmask 916230
    %535 = vst.msk [vmem:[#allocation8 - $0x6] sm:$0x40] %vm534, %v532
    %536 = vrot.lane.b32.xlu0 %v502, 112
    %v537 = vpop.permute.xlu0 %536
    %vm539 = vcmask 1048455
    %540 = vst.msk [vmem:[#allocation8 - $0x7] sm:$0x80] %vm539, %v537
    %541 = vst.msk [vmem:[#allocation8 + $0x1] sm:$0x1] %vm75, %v503
    %543 = vrot.lane.b32.xlu0 %v503, 16
    %v544 = vpop.permute.xlu0 %543
    %546 = vst.msk [vmem:[#allocation8] sm:$0x2] %vm509, %v544
    %547 = vrot.lane.b32.xlu0 %v503, 32
    %v548 = vpop.permute.xlu0 %547
    %550 = vst.msk [vmem:[#allocation8 - $0x1] sm:$0x4] %vm514, %v548
    %551 = vrot.lane.b32.xlu0 %v503, 48
    %v552 = vpop.permute.xlu0 %551
    %554 = vst.msk [vmem:[#allocation8 - $0x2] sm:$0x8] %vm519, %v552
    %555 = vrot.lane.b32.xlu0 %v503, 64
    %v556 = vpop.permute.xlu0 %555
    %558 = vst.msk [vmem:[#allocation8 - $0x3] sm:$0x10] %vm524, %v556
    %559 = vrot.lane.b32.xlu0 %v503, 80
    %v560 = vpop.permute.xlu0 %559
    %562 = vst.msk [vmem:[#allocation8 - $0x4] sm:$0x20] %vm529, %v560
    %563 = vrot.lane.b32.xlu0 %v503, 96
    %v564 = vpop.permute.xlu0 %563
    %566 = vst.msk [vmem:[#allocation8 - $0x5] sm:$0x40] %vm534, %v564
    %567 = vrot.lane.b32.xlu0 %v503, 112
    %v568 = vpop.permute.xlu0 %567
    %570 = vst.msk [vmem:[#allocation8 - $0x6] sm:$0x80] %vm539, %v568
    // Predicated region
    $region18: #{tpu_custom_call.1} parent=1 // pred_check
      _
    $region19: #{tpu_custom_call.1} parent=1 // pred_check_branch
      %572 = sbr.rel (0) target = $region21
    $region20: #{tpu_custom_call.1} parent=1 // pred_region
      %574 = vsyncadd [#allocation5], 0
      %s576 = sshll.u32 [#allocation8], 4
      %s577 = int_to_ptr.vmem [resolvable:$true] %s576
      %s578 = sshll.u32 %s2, 4
      %s579 = int_to_ptr.hbm [resolvable:$true] %s578
      %581 = dma.vmem_to_hbm [thread:$0]  %s577, 32, %s579, [#allocation5]
    $region21: #{tpu_custom_call.1} parent=1 // pred_fallthru
      _
    // Predicated region
    $region22: #{tpu_custom_call.1} parent=1 // pred_check
      _
    $region23: #{tpu_custom_call.1} parent=1 // pred_check_branch
      %583 = sbr.rel (0) target = $region25
    $region24: #{tpu_custom_call.1} parent=1 // pred_region
      %585 = dma.done [#allocation5], 32
    $region25: #{tpu_custom_call.1} parent=1 // pred_fallthru
      _
    %586 = vsyncpa [#allocation4], 1
    %587 = vsyncpa [#allocation7], 1
    %588 = vsyncpa [#allocation5], 1

</llo_original>
